<compile_context>
chip_gen: v6e
topology: v6e:2x2x1
jax: 0.10.0
libtpu: 0.0.40
codegen_flags: <defaults>
</compile_context>

<pallas_src>
import jax
import jax.numpy as jnp
from jax.experimental import pallas as pl
from jax.experimental.pallas import tpu as pltpu


def _conv1x1_kernel(w_ref, b_ref, x_ref, o_ref):
    # w_ref : (C,) SMEM  -- conv weights, pre-scaled by temp
    # b_ref : (1,) SMEM  -- conv bias,    pre-scaled by temp
    # x_ref : (C, TN) VMEM -- channel-major activations (lane axis = B*H*W tile)
    # o_ref : (1, TN) VMEM -- lane-dense output slab
    n_ch = x_ref.shape[0]
    acc = x_ref[pl.ds(0, 1), :] * w_ref[0]
    for c in range(1, n_ch):          # static C -> fully unrolled VPU mul/adds
        acc = acc + x_ref[pl.ds(c, 1), :] * w_ref[c]
    o_ref[...] = acc + b_ref[0]


def _pick_lane_tile(n_lanes, n_ch, bytes_per_elem=4, tile_budget_bytes=2 << 20):
    """Largest multiple-of-128 lane tile dividing n_lanes, capped so a
    double-buffered input tile stays far inside scoped VMEM on v5e/v6e/v7x."""
    if n_lanes % 128 != 0:
        return n_lanes                      # full-extent block
    cap = max(128, (tile_budget_bytes // (bytes_per_elem * n_ch)) // 128 * 128)
    tn = min(n_lanes, cap)
    while n_lanes % tn != 0:
        tn -= 128
    return tn


def conv_classifier_forward(x_nchw, weight, bias, temp):
    """x_nchw: (B, C, H, W) f32; weight: (1, C, 1, 1); bias: (1,); temp: scalar."""
    B, C, H, W = x_nchw.shape
    HW = H * W
    N = B * HW

    # Channel-major, lane-dense layout: (C, B*HW).
    x_cm = jnp.transpose(x_nchw.reshape(B, C, HW), (1, 0, 2)).reshape(C, N)
    x_cm = x_cm.astype(jnp.float32)

    # Fold the temperature into the (tiny) affine params:
    #   (x . w + b) * temp == x . (w*temp) + b*temp
    t = jnp.asarray(temp, jnp.float32)
    w_s = weight.reshape(C).astype(jnp.float32) * t     # (C,) SMEM scalars
    b_s = bias.reshape(1).astype(jnp.float32) * t       # (1,) SMEM scalar

    tn = _pick_lane_tile(N, C)
    grid = (N // tn,)

    out = pl.pallas_call(
        _conv1x1_kernel,
        out_shape=jax.ShapeDtypeStruct((1, N), jnp.float32),
        grid=grid,
        in_specs=[
            pl.BlockSpec(memory_space=pltpu.MemorySpace.SMEM),   # w * temp
            pl.BlockSpec(memory_space=pltpu.MemorySpace.SMEM),   # b * temp
            pl.BlockSpec((C, tn), lambda i: (0, i)),             # x lane tile
        ],
        out_specs=pl.BlockSpec((1, tn), lambda i: (0, i)),
        compiler_params=pltpu.CompilerParams(
            dimension_semantics=("parallel",)),
    )(w_s, b_s, x_cm)

    # (1, B*HW) slab -> (B, 1, H, W); free wrapper-side reshape.
    return out.reshape(B, 1, H, W)


if __name__ == "__main__":
    key = jax.random.PRNGKey(0)
    kx, kw, kb = jax.random.split(key, 3)

    B, C, H, W = 2, 4, 16, 16          # in_dim = 4
    temp = 1.5                          # fixed scalar (learn_temp=False)

    x = jax.random.normal(kx, (B, C, H, W), dtype=jnp.float32)
    # nn.Conv2d(in_dim, 1, kernel_size=1): weight (1, C, 1, 1), bias (1,)
    weight = jax.random.normal(kw, (1, C, 1, 1), dtype=jnp.float32) * 0.1
    bias = jax.random.normal(kb, (1,), dtype=jnp.float32) * 0.1

    seg = conv_classifier_forward(x, weight, bias, temp)
    seg = jax.block_until_ready(seg)

    # reference: 1x1 conv == channel-wise linear, then * temp
    ref = ((jnp.einsum("bchw,c->bhw", x, weight.reshape(C)) + bias[0]) * temp)[:, None]
    assert seg.shape == (B, 1, H, W)
    assert jnp.allclose(seg, ref, atol=1e-5, rtol=1e-5)

    print("KERNEL_OK")
</pallas_src>

<mosaic_0001>
module attributes {stable_mosaic.version = 11 : i64} {
  func.func @_conv1x1_kernel(%arg0: i32, %arg1: memref<4xf32, #tpu.memory_space<smem>>, %arg2: memref<1xf32, #tpu.memory_space<smem>>, %arg3: memref<4x512xf32, #tpu.memory_space<vmem>>, %arg4: memref<1x512xf32, #tpu.memory_space<vmem>>) attributes {dimension_semantics = [#tpu.dimension_semantics<parallel>], iteration_bounds = array<i64: 1>, scalar_prefetch = 0 : i64, scratch_operands = 0 : i64, tpu.core_type = #tpu.core_type<tc>, window_params = [{transform_indices = @transform_0, window_bounds = array<i64: 4>}, {transform_indices = @transform_1, window_bounds = array<i64: 1>}, {transform_indices = @transform_2, window_bounds = array<i64: 4, 512>}, {transform_indices = @transform_3, window_bounds = array<i64: 1, 512>}]} {
    %c0 = arith.constant 0 : index
    %c0_0 = arith.constant 0 : index
    %0 = vector.load %arg3[%c0, %c0_0] : memref<4x512xf32, #tpu.memory_space<vmem>>, vector<1x512xf32>
    %c0_1 = arith.constant 0 : index
    %1 = memref.load %arg1[%c0_1] : memref<4xf32, #tpu.memory_space<smem>>
    %2 = vector.broadcast %1 : f32 to vector<1x512xf32>
    %3 = arith.mulf %0, %2 : vector<1x512xf32>
    %c1 = arith.constant 1 : index
    %c0_2 = arith.constant 0 : index
    %4 = vector.load %arg3[%c1, %c0_2] : memref<4x512xf32, #tpu.memory_space<vmem>>, vector<1x512xf32>
    %c1_3 = arith.constant 1 : index
    %5 = memref.load %arg1[%c1_3] : memref<4xf32, #tpu.memory_space<smem>>
    %6 = vector.broadcast %5 : f32 to vector<1x512xf32>
    %7 = arith.mulf %4, %6 : vector<1x512xf32>
    %8 = arith.addf %3, %7 : vector<1x512xf32>
    %c2 = arith.constant 2 : index
    %c0_4 = arith.constant 0 : index
    %9 = vector.load %arg3[%c2, %c0_4] : memref<4x512xf32, #tpu.memory_space<vmem>>, vector<1x512xf32>
    %c2_5 = arith.constant 2 : index
    %10 = memref.load %arg1[%c2_5] : memref<4xf32, #tpu.memory_space<smem>>
    %11 = vector.broadcast %10 : f32 to vector<1x512xf32>
    %12 = arith.mulf %9, %11 : vector<1x512xf32>
    %13 = arith.addf %8, %12 : vector<1x512xf32>
    %c3 = arith.constant 3 : index
    %c0_6 = arith.constant 0 : index
    %14 = vector.load %arg3[%c3, %c0_6] : memref<4x512xf32, #tpu.memory_space<vmem>>, vector<1x512xf32>
    %c3_7 = arith.constant 3 : index
    %15 = memref.load %arg1[%c3_7] : memref<4xf32, #tpu.memory_space<smem>>
    %16 = vector.broadcast %15 : f32 to vector<1x512xf32>
    %17 = arith.mulf %14, %16 : vector<1x512xf32>
    %18 = arith.addf %13, %17 : vector<1x512xf32>
    %c0_8 = arith.constant 0 : index
    %19 = memref.load %arg2[%c0_8] : memref<1xf32, #tpu.memory_space<smem>>
    %20 = vector.broadcast %19 : f32 to vector<1x512xf32>
    %21 = arith.addf %18, %20 : vector<1x512xf32>
    %c0_9 = arith.constant 0 : index
    %c0_10 = arith.constant 0 : index
    %22 = vector.load %arg4[%c0_9, %c0_10] : memref<1x512xf32, #tpu.memory_space<vmem>>, vector<1x512xf32>
    tpu.vector_store %arg4[%c0_9, %c0_10], %21 {strides = array<i32>} : memref<1x512xf32, #tpu.memory_space<vmem>>, vector<1x512xf32>,
    return
  }
  func.func @transform_0(%arg0: i32) -> i32 {
    %c0_i32 = arith.constant 0 : i32
    %c0_i32_0 = arith.constant 0 : i32
    return %c0_i32 : i32
  }
  func.func @transform_1(%arg0: i32) -> i32 {
    %c0_i32 = arith.constant 0 : i32
    %c0_i32_0 = arith.constant 0 : i32
    return %c0_i32 : i32
  }
  func.func @transform_2(%arg0: i32) -> (i32, i32) {
    %c0_i32 = arith.constant 0 : i32
    %c0_i32_0 = arith.constant 0 : i32
    return %c0_i32, %arg0 : i32, i32
  }
  func.func @transform_3(%arg0: i32) -> (i32, i32) {
    %c0_i32 = arith.constant 0 : i32
    %c0_i32_0 = arith.constant 0 : i32
    return %c0_i32, %arg0 : i32, i32
  }
}

</mosaic_0001>

<llo_original>
// kernel: tpu_custom_call.1
$region0: #{tpu_custom_call.1}
  #allocation0 [shape = 'u32[]', space=smem, size = 0x4, offset = 0x4, fixed_abs, tag = 'smem constant byte address 0x4 - core index']
  #allocation1 [shape = 'u32[144,128]{1,0:T(1,128)}', space=vmem, size = 0x12000, scoped, tag = 'internal scratch']
  #allocation2 [shape = 'f32[1]{0:T(128)S(6)}', space=smem, size = 0x200, scoped, tag = 'scoped memory for tpu_custom_call.1']
  %s0 = inlined_call_operand.vmem [shape: f32[4], index: 0, kind: input, shape index: {}]
  %s1 = inlined_call_operand.<no memory space> [shape: f32[1], index: 1, kind: input, shape index: {}]
  %s2 = inlined_call_operand.hbm [shape: f32[4,512], index: 2, kind: input, shape index: {}]
  %s3 = inlined_call_operand.hbm [shape: f32[1,512], index: 3, kind: output, shape index: {}]
  %s4 = sld [smem:[#allocation0]]
  $region30: #{tpu_custom_call.1} parent=0
    _
  %s6 = ssub.s32 1, %s4
  %s7 = scalar_select 0, %s6, %s4
  %8 = sst [smem:[#allocation2]] %s1
  $region1: #{tpu_custom_call.1} parent=0
    #allocation3 [shape = 'u8[512]{0}', space=smem, size = 0x200, scoped, tag = 'input window, operand 0, single buffered']
    #allocation4 [shape = 's32[1]{0}', space=sflag, size = 0x4, scoped, tag = 'scoped memory for tpu_custom_call.1']
    #allocation5 [shape = 's32[1]{0}', space=sflag, size = 0x4, scoped, tag = 'scoped memory for tpu_custom_call.1']
    #allocation6 [shape = 's32[1]{0}', space=sflag, size = 0x4, scoped, tag = 'scoped memory for tpu_custom_call.1']
    #allocation7 [shape = 'u8[8192]{0}', space=vmem, size = 0x2000, scoped, tag = 'input window, operand 2, single buffered']
    #allocation8 [shape = 'u8[2048]{0}', space=vmem, size = 0x800, scoped, tag = 'output window, operand 0, single buffered']
    %9 = vsyncpa [#allocation6], 0
    %10 = vsyncpa [#allocation4], 0
    %11 = vsyncpa [#allocation5], 0
    // Predicated region
    $region2: #{tpu_custom_call.1} parent=1 // pred_check
      _
    $region3: #{tpu_custom_call.1} parent=1 // pred_check_branch
      %13 = sbr.rel (0) target = $region5
    $region4: #{tpu_custom_call.1} parent=1 // pred_region
      %s15 = ssub.s32 16, 16
      %16 = vsyncadd [#allocation6], %s15
      %s18 = sshll.u32 %s0, 4
      %s19 = int_to_ptr.vmem [resolvable:$true] %s18
      %21 = dma.vmem_to_smem %s19, 16, [#allocation3], [#allocation6]
    $region5: #{tpu_custom_call.1} parent=1 // pred_fallthru
      _
    // Predicated region
    $region6: #{tpu_custom_call.1} parent=1 // pred_check
      _
    $region7: #{tpu_custom_call.1} parent=1 // pred_check_branch
      %23 = sbr.rel (0) target = $region9
    $region8: #{tpu_custom_call.1} parent=1 // pred_region
      _
    $region9: #{tpu_custom_call.1} parent=1 // pred_fallthru
      _
    // Predicated region
    $region10: #{tpu_custom_call.1} parent=1 // pred_check
      _
    $region11: #{tpu_custom_call.1} parent=1 // pred_check_branch
      %25 = sbr.rel (0) target = $region13
    $region12: #{tpu_custom_call.1} parent=1 // pred_region
      %s27 = ssub.s32 256, 256
      %28 = vsyncadd [#allocation4], %s27
      %s30 = sshll.u32 [#allocation7], 4
      %s31 = int_to_ptr.vmem [resolvable:$true] %s30
      %33 = dma.hbm_to_vmem [thread:$0]  %s2, 256, %s31, [#allocation4]
    $region13: #{tpu_custom_call.1} parent=1 // pred_fallthru
      _
    // Predicated region
    $region14: #{tpu_custom_call.1} parent=1 // pred_check
      _
    $region15: #{tpu_custom_call.1} parent=1 // pred_check_branch
      %35 = sbr.rel (0) target = $region17
    $region16: #{tpu_custom_call.1} parent=1 // pred_region
      %36 = dma.done [#allocation6], 16
    $region17: #{tpu_custom_call.1} parent=1 // pred_fallthru
      _
    // Predicated region
    $region18: #{tpu_custom_call.1} parent=1 // pred_check
      _
    $region19: #{tpu_custom_call.1} parent=1 // pred_check_branch
      %38 = sbr.rel (0) target = $region21
    $region20: #{tpu_custom_call.1} parent=1 // pred_region
      %39 = dma.done [#allocation4], 256
    $region21: #{tpu_custom_call.1} parent=1 // pred_fallthru
      _
    %40 = sfence
    %v41 = vld [vmem:[#allocation7] ss:$4 sm:$0xf]
    %s42 = sld [smem:[#allocation3]]
    %v43 = vstv %s42
    %v44 = vmul.f32 %v41, %v43
    %s45 = scalar_lea.vmem [#allocation7], 1
    %v46 = vld [vmem:[%s45] ss:$4 sm:$0xf]
    %s47 = sld [smem:[#allocation3 + $0x1]]
    %v48 = vstv %s47
    %v49 = vmul.f32 %v46, %v48
    %v50 = vadd.f32 %v44, %v49
    %s51 = scalar_lea.vmem [#allocation7], 2
    %v52 = vld [vmem:[%s51] ss:$4 sm:$0xf]
    %s53 = sld [smem:[#allocation3 + $0x2]]
    %v54 = vstv %s53
    %v55 = vmul.f32 %v52, %v54
    %v56 = vadd.f32 %v50, %v55
    %s57 = scalar_lea.vmem [#allocation7], 3
    %v58 = vld [vmem:[%s57] ss:$4 sm:$0xf]
    %s59 = sld [smem:[#allocation3 + $0x3]]
    %v60 = vstv %s59
    %v61 = vmul.f32 %v58, %v60
    %v62 = vadd.f32 %v56, %v61
    %s63 = sld [smem:[#allocation2]]
    %v64 = vstv %s63
    %v65 = vadd.f32 %v62, %v64
    %v66 = vlaneseq
    %vm67 = vcmp.ge.s32.totalorder %v66, 0
    %vm68 = vcmp.lt.s32.totalorder %v66, 512
    %vm69 = vmand %vm67, %vm68
    %70 = vst.msk [vmem:[#allocation8] sm:$0xf] %vm69, %v65
    // Predicated region
    $region22: #{tpu_custom_call.1} parent=1 // pred_check
      _
    $region23: #{tpu_custom_call.1} parent=1 // pred_check_branch
      %72 = sbr.rel (0) target = $region25
    $region24: #{tpu_custom_call.1} parent=1 // pred_region
      %s74 = ssub.s32 64, 64
      %75 = vsyncadd [#allocation5], %s74
      %s77 = sshll.u32 [#allocation8], 4
      %s78 = int_to_ptr.vmem [resolvable:$true] %s77
      %80 = dma.vmem_to_hbm [thread:$0]  %s78, 64, %s3, [#allocation5]
    $region25: #{tpu_custom_call.1} parent=1 // pred_fallthru
      _
    // Predicated region
    $region26: #{tpu_custom_call.1} parent=1 // pred_check
      _
    $region27: #{tpu_custom_call.1} parent=1 // pred_check_branch
      %82 = sbr.rel (0) target = $region29
    $region28: #{tpu_custom_call.1} parent=1 // pred_region
      %83 = dma.done [#allocation5], 64
    $region29: #{tpu_custom_call.1} parent=1 // pred_fallthru
      _
    %84 = vsyncpa [#allocation4], 1
    %85 = vsyncpa [#allocation5], 1
    %86 = vsyncpa [#allocation6], 1

</llo_original>
